<compile_context>
chip_gen: v6e
topology: v6e:2x2x1
jax: 0.10.0
libtpu: 0.0.40
codegen_flags: <defaults>
</compile_context>

<pallas_src>
import math

import jax
import jax.numpy as jnp
from jax.experimental import pallas as pl
from jax.experimental.pallas import tpu as pltpu


def _round_up(x, m):
    return ((x + m - 1) // m) * m


def soft_q_kernel(s_ref, a_ref, w1s_ref, w1a_ref, b1_ref,
                  w2_ref, b2_ref, w3_ref, b3_ref, o_ref):
    # Layer 1: state @ W1_s + action @ W1_a + b1, relu        -> (TB, Hp)
    h1 = jnp.dot(s_ref[...], w1s_ref[...], preferred_element_type=jnp.float32)
    h1 = h1 + jnp.dot(a_ref[...], w1a_ref[...],
                      preferred_element_type=jnp.float32)
    h1 = jnp.maximum(h1 + b1_ref[...], 0.0)
    # Layer 2                                                  -> (TB, Hp)
    h2 = jnp.dot(h1, w2_ref[...], preferred_element_type=jnp.float32)
    h2 = jnp.maximum(h2 + b2_ref[...], 0.0)
    # Layer 3 (Hp -> 1): VPU multiply + sublane reduce (XLU) instead of an
    # N=1 MXU pass; the result is already a lane-dense (1, TB) row.
    h2t = h2.T                                                  # (Hp, TB)
    q_row = jnp.sum(h2t * w3_ref[...], axis=0, keepdims=True) + b3_ref[...]
    o_ref[...] = q_row[None].astype(o_ref.dtype)                # (1, 1, TB)


def _soft_q_forward(state, action, params, *, tb=128):
    """state: (B, S), action: (B, A); returns (B, 1) Q-values."""
    B, S = state.shape
    _, A = action.shape
    w1s, w1a = params["w1s"], params["w1a"]
    b1, w2, b2 = params["b1"], params["w2"], params["b2"]
    w3, b3 = params["w3"], params["b3"]
    Hp = w1s.shape[1]

    TB = tb
    Bp = _round_up(B, TB)
    n_tiles = Bp // TB
    if Bp != B:  # pad batch so every tile is full (padded rows are sliced off)
        state = jnp.pad(state, ((0, Bp - B), (0, 0)))
        action = jnp.pad(action, ((0, Bp - B), (0, 0)))

    out = pl.pallas_call(
        soft_q_kernel,
        out_shape=jax.ShapeDtypeStruct((n_tiles, 1, TB), jnp.float32),
        grid_spec=pltpu.PrefetchScalarGridSpec(
            num_scalar_prefetch=0,
            grid=(n_tiles,),
            in_specs=[
                pl.BlockSpec((TB, S), lambda i: (i, 0)),    # state tile
                pl.BlockSpec((TB, A), lambda i: (i, 0)),    # action tile
                pl.BlockSpec((S, Hp), lambda i: (0, 0)),    # W1_state  (resident)
                pl.BlockSpec((A, Hp), lambda i: (0, 0)),    # W1_action (resident)
                pl.BlockSpec((1, Hp), lambda i: (0, 0)),    # b1
                pl.BlockSpec((Hp, Hp), lambda i: (0, 0)),   # W2
                pl.BlockSpec((1, Hp), lambda i: (0, 0)),    # b2
                pl.BlockSpec((Hp, 1), lambda i: (0, 0)),    # W3 (column)
                pl.BlockSpec((1, 1), lambda i: (0, 0)),     # b3
            ],
            out_specs=pl.BlockSpec((1, 1, TB), lambda i: (i, 0, 0)),
        ),
        compiler_params=pltpu.CompilerParams(
            dimension_semantics=("parallel",)),
    )(state, action, w1s, w1a, b1, w2, b2, w3, b3)

    # (n_tiles, 1, TB) -> (Bp,) -> (B, 1)
    return out.reshape(Bp)[:B].reshape(B, 1)


soft_q_forward = jax.jit(_soft_q_forward, static_argnames=("tb",))


def init_params(key, state_size, action_size, hidden_size, init_w=0.003):
    """nn.Linear-default init; weights stored transposed ([in, out]) and the
    hidden dim zero-padded to a multiple of 128 (padded units are dead, so the
    network is numerically identical to the unpadded one)."""
    S, A, H = state_size, action_size, hidden_size
    Hp = _round_up(max(H, 1), 128)
    k = jax.random.split(key, 6)

    bound1 = 1.0 / math.sqrt(S + A)
    w1 = jax.random.uniform(k[0], (S + A, H), jnp.float32, -bound1, bound1)
    b1 = jax.random.uniform(k[1], (H,), jnp.float32, -bound1, bound1)
    bound2 = 1.0 / math.sqrt(H)
    w2 = jax.random.uniform(k[2], (H, H), jnp.float32, -bound2, bound2)
    b2 = jax.random.uniform(k[3], (H,), jnp.float32, -bound2, bound2)
    # linear3: uniform_(-init_w, init_w) for both weight and bias
    w3 = jax.random.uniform(k[4], (H, 1), jnp.float32, -init_w, init_w)
    b3 = jax.random.uniform(k[5], (1,), jnp.float32, -init_w, init_w)

    return {
        "w1s": jnp.zeros((S, Hp), jnp.float32).at[:, :H].set(w1[:S]),
        "w1a": jnp.zeros((A, Hp), jnp.float32).at[:, :H].set(w1[S:]),
        "b1":  jnp.zeros((1, Hp), jnp.float32).at[0, :H].set(b1),
        "w2":  jnp.zeros((Hp, Hp), jnp.float32).at[:H, :H].set(w2),
        "b2":  jnp.zeros((1, Hp), jnp.float32).at[0, :H].set(b2),
        "w3":  jnp.zeros((Hp, 1), jnp.float32).at[:H, 0].set(w3[:, 0]),
        "b3":  b3.reshape(1, 1),
    }


if __name__ == "__main__":
    key = jax.random.PRNGKey(0)
    k_state, k_action, k_params = jax.random.split(key, 3)

    # Small CartPole-ish shapes: state=4, action=2, hidden=32, batch=8.
    B, S, A, H = 8, 4, 2, 32
    state = jax.random.normal(k_state, (B, S), jnp.float32)
    action = jax.random.normal(k_action, (B, A), jnp.float32)
    params = init_params(k_params, S, A, H)

    q = soft_q_forward(state, action, params)
    q = jax.block_until_ready(q)
    assert q.shape == (B, 1)

    # Plain-JAX reference (same math; zero-padded weights are exact).
    x = jnp.concatenate([state, action], axis=1)
    w1_full = jnp.concatenate([params["w1s"], params["w1a"]], axis=0)
    h = jnp.maximum(x @ w1_full + params["b1"], 0.0)
    h = jnp.maximum(h @ params["w2"] + params["b2"], 0.0)
    ref = h @ params["w3"] + params["b3"]

    assert jnp.allclose(q, ref, atol=2e-5, rtol=1e-3), (
        "max abs diff = %g" % float(jnp.max(jnp.abs(q - ref))))

    print("KERNEL_OK")
</pallas_src>

<mosaic_0001>
module attributes {stable_mosaic.version = 11 : i64} {
  func.func @soft_q_kernel(%arg0: i32, %arg1: memref<128x4xf32, #tpu.memory_space<vmem>>, %arg2: memref<128x2xf32, #tpu.memory_space<vmem>>, %arg3: memref<4x128xf32, #tpu.memory_space<vmem>>, %arg4: memref<2x128xf32, #tpu.memory_space<vmem>>, %arg5: memref<1x128xf32, #tpu.memory_space<vmem>>, %arg6: memref<128x128xf32, #tpu.memory_space<vmem>>, %arg7: memref<1x128xf32, #tpu.memory_space<vmem>>, %arg8: memref<128x1xf32, #tpu.memory_space<vmem>>, %arg9: memref<1x1xf32, #tpu.memory_space<vmem>>, %arg10: memref<1x1x128xf32, #tpu.memory_space<vmem>>) attributes {dimension_semantics = [#tpu.dimension_semantics<parallel>], iteration_bounds = array<i64: 1>, scalar_prefetch = 0 : i64, scratch_operands = 0 : i64, tpu.core_type = #tpu.core_type<tc>, window_params = [{transform_indices = @transform_0, window_bounds = array<i64: 128, 4>}, {transform_indices = @transform_1, window_bounds = array<i64: 128, 2>}, {pipeline_mode = #tpu.pipeline_mode<synchronous>, transform_indices = @transform_2, window_bounds = array<i64: 4, 128>}, {pipeline_mode = #tpu.pipeline_mode<synchronous>, transform_indices = @transform_3, window_bounds = array<i64: 2, 128>}, {pipeline_mode = #tpu.pipeline_mode<synchronous>, transform_indices = @transform_4, window_bounds = array<i64: 1, 128>}, {pipeline_mode = #tpu.pipeline_mode<synchronous>, transform_indices = @transform_5, window_bounds = array<i64: 128, 128>}, {pipeline_mode = #tpu.pipeline_mode<synchronous>, transform_indices = @transform_6, window_bounds = array<i64: 1, 128>}, {pipeline_mode = #tpu.pipeline_mode<synchronous>, transform_indices = @transform_7, window_bounds = array<i64: 128, 1>}, {pipeline_mode = #tpu.pipeline_mode<synchronous>, transform_indices = @transform_8, window_bounds = array<i64: 1, 1>}, {transform_indices = @transform_9, window_bounds = array<i64: 1, 1, 128>}]} {
    %c0 = arith.constant 0 : index
    %c0_0 = arith.constant 0 : index
    %0 = vector.load %arg1[%c0, %c0_0] : memref<128x4xf32, #tpu.memory_space<vmem>>, vector<128x4xf32>
    %c0_1 = arith.constant 0 : index
    %c0_2 = arith.constant 0 : index
    %1 = vector.load %arg3[%c0_1, %c0_2] : memref<4x128xf32, #tpu.memory_space<vmem>>, vector<4x128xf32>
    %cst = arith.constant dense<0.000000e+00> : vector<128x128xf32>
    %2 = tpu.matmul %0, %1, %cst {dimension_numbers = #tpu.dot_dimension_numbers<[1], [0], [0], [1], [0, 0, 1, 1], [], []>} : vector<128x4xf32>, vector<4x128xf32>, vector<128x128xf32> -> vector<128x128xf32>
    %c0_3 = arith.constant 0 : index
    %c0_4 = arith.constant 0 : index
    %3 = vector.load %arg2[%c0_3, %c0_4] : memref<128x2xf32, #tpu.memory_space<vmem>>, vector<128x2xf32>
    %c0_5 = arith.constant 0 : index
    %c0_6 = arith.constant 0 : index
    %4 = vector.load %arg4[%c0_5, %c0_6] : memref<2x128xf32, #tpu.memory_space<vmem>>, vector<2x128xf32>
    %cst_7 = arith.constant dense<0.000000e+00> : vector<128x128xf32>
    %5 = tpu.matmul %3, %4, %cst_7 {dimension_numbers = #tpu.dot_dimension_numbers<[1], [0], [0], [1], [0, 0, 1, 1], [], []>} : vector<128x2xf32>, vector<2x128xf32>, vector<128x128xf32> -> vector<128x128xf32>
    %6 = arith.addf %2, %5 : vector<128x128xf32>
    %c0_8 = arith.constant 0 : index
    %c0_9 = arith.constant 0 : index
    %7 = vector.load %arg5[%c0_8, %c0_9] : memref<1x128xf32, #tpu.memory_space<vmem>>, vector<1x128xf32>
    %8 = vector.broadcast %7 : vector<1x128xf32> to vector<128x128xf32>
    %9 = arith.addf %6, %8 : vector<128x128xf32>
    %cst_10 = arith.constant 0.000000e+00 : f32
    %10 = vector.broadcast %cst_10 : f32 to vector<128x128xf32>
    %11 = arith.maximumf %9, %10 : vector<128x128xf32>
    %c0_11 = arith.constant 0 : index
    %c0_12 = arith.constant 0 : index
    %12 = vector.load %arg6[%c0_11, %c0_12] : memref<128x128xf32, #tpu.memory_space<vmem>>, vector<128x128xf32>
    %cst_13 = arith.constant dense<0.000000e+00> : vector<128x128xf32>
    %13 = tpu.matmul %11, %12, %cst_13 {dimension_numbers = #tpu.dot_dimension_numbers<[1], [0], [0], [1], [0, 0, 1, 1], [], []>} : vector<128x128xf32>, vector<128x128xf32>, vector<128x128xf32> -> vector<128x128xf32>
    %c0_14 = arith.constant 0 : index
    %c0_15 = arith.constant 0 : index
    %14 = vector.load %arg7[%c0_14, %c0_15] : memref<1x128xf32, #tpu.memory_space<vmem>>, vector<1x128xf32>
    %15 = vector.broadcast %14 : vector<1x128xf32> to vector<128x128xf32>
    %16 = arith.addf %13, %15 : vector<128x128xf32>
    %cst_16 = arith.constant 0.000000e+00 : f32
    %17 = vector.broadcast %cst_16 : f32 to vector<128x128xf32>
    %18 = arith.maximumf %16, %17 : vector<128x128xf32>
    %19 = tpu.transpose %18, [1, 0] : vector<128x128xf32> -> vector<128x128xf32>
    %c0_17 = arith.constant 0 : index
    %c0_18 = arith.constant 0 : index
    %20 = vector.load %arg8[%c0_17, %c0_18] : memref<128x1xf32, #tpu.memory_space<vmem>>, vector<128x1xf32>
    %21 = vector.broadcast %20 : vector<128x1xf32> to vector<128x128xf32>
    %22 = arith.mulf %19, %21 : vector<128x128xf32>
    %cst_19 = arith.constant dense<0.000000e+00> : vector<128xf32>
    %23 = vector.multi_reduction <add>, %22, %cst_19 [0] : vector<128x128xf32> to vector<128xf32>
    %24 = vector.shape_cast %23 : vector<128xf32> to vector<1x128xf32>
    %c0_20 = arith.constant 0 : index
    %c0_21 = arith.constant 0 : index
    %25 = vector.load %arg9[%c0_20, %c0_21] : memref<1x1xf32, #tpu.memory_space<vmem>>, vector<1x1xf32>
    %26 = vector.broadcast %25 : vector<1x1xf32> to vector<1x128xf32>
    %27 = arith.addf %24, %26 : vector<1x128xf32>
    %28 = vector.shape_cast %27 : vector<1x128xf32> to vector<1x1x128xf32>
    %c0_22 = arith.constant 0 : index
    %c0_23 = arith.constant 0 : index
    %c0_24 = arith.constant 0 : index
    %29 = vector.load %arg10[%c0_22, %c0_23, %c0_24] : memref<1x1x128xf32, #tpu.memory_space<vmem>>, vector<1x1x128xf32>
    tpu.vector_store %arg10[%c0_22, %c0_23, %c0_24], %28 {strides = array<i32>} : memref<1x1x128xf32, #tpu.memory_space<vmem>>, vector<1x1x128xf32>,
    return
  }
  func.func @transform_0(%arg0: i32) -> (i32, i32) {
    %c0_i32 = arith.constant 0 : i32
    %c0_i32_0 = arith.constant 0 : i32
    return %arg0, %c0_i32 : i32, i32
  }
  func.func @transform_1(%arg0: i32) -> (i32, i32) {
    %c0_i32 = arith.constant 0 : i32
    %c0_i32_0 = arith.constant 0 : i32
    return %arg0, %c0_i32 : i32, i32
  }
  func.func @transform_2(%arg0: i32) -> (i32, i32) {
    %c0_i32 = arith.constant 0 : i32
    %c0_i32_0 = arith.constant 0 : i32
    %c0_i32_1 = arith.constant 0 : i32
    return %c0_i32, %c0_i32_0 : i32, i32
  }
  func.func @transform_3(%arg0: i32) -> (i32, i32) {
    %c0_i32 = arith.constant 0 : i32
    %c0_i32_0 = arith.constant 0 : i32
    %c0_i32_1 = arith.constant 0 : i32
    return %c0_i32, %c0_i32_0 : i32, i32
  }
  func.func @transform_4(%arg0: i32) -> (i32, i32) {
    %c0_i32 = arith.constant 0 : i32
    %c0_i32_0 = arith.constant 0 : i32
    %c0_i32_1 = arith.constant 0 : i32
    return %c0_i32, %c0_i32_0 : i32, i32
  }
  func.func @transform_5(%arg0: i32) -> (i32, i32) {
    %c0_i32 = arith.constant 0 : i32
    %c0_i32_0 = arith.constant 0 : i32
    %c0_i32_1 = arith.constant 0 : i32
    return %c0_i32, %c0_i32_0 : i32, i32
  }
  func.func @transform_6(%arg0: i32) -> (i32, i32) {
    %c0_i32 = arith.constant 0 : i32
    %c0_i32_0 = arith.constant 0 : i32
    %c0_i32_1 = arith.constant 0 : i32
    return %c0_i32, %c0_i32_0 : i32, i32
  }
  func.func @transform_7(%arg0: i32) -> (i32, i32) {
    %c0_i32 = arith.constant 0 : i32
    %c0_i32_0 = arith.constant 0 : i32
    %c0_i32_1 = arith.constant 0 : i32
    return %c0_i32, %c0_i32_0 : i32, i32
  }
  func.func @transform_8(%arg0: i32) -> (i32, i32) {
    %c0_i32 = arith.constant 0 : i32
    %c0_i32_0 = arith.constant 0 : i32
    %c0_i32_1 = arith.constant 0 : i32
    return %c0_i32, %c0_i32_0 : i32, i32
  }
  func.func @transform_9(%arg0: i32) -> (i32, i32, i32) {
    %c0_i32 = arith.constant 0 : i32
    %c0_i32_0 = arith.constant 0 : i32
    %c0_i32_1 = arith.constant 0 : i32
    return %arg0, %c0_i32, %c0_i32_0 : i32, i32, i32
  }
}

</mosaic_0001>

<llo_original>
// kernel: _soft_q_forward.1
$region0: #{_soft_q_forward.1}
  #allocation0 [shape = 'u32[]', space=smem, size = 0x4, offset = 0x4, fixed_abs, tag = 'smem constant byte address 0x4 - core index']
  #allocation1 [shape = 'u32[144,128]{1,0:T(1,128)}', space=vmem, size = 0x12000, scoped, tag = 'internal scratch']
  #allocation2 [shape = 'f32[1,1]{1,0:T(1,128)S(1)}', space=vmem, size = 0x200, scoped, tag = 'scoped memory for _soft_q_forward.1']
  %s0 = inlined_call_operand.vmem [shape: f32[128,4], index: 0, kind: input, shape index: {}]
  %s1 = inlined_call_operand.vmem [shape: f32[128,2], index: 1, kind: input, shape index: {}]
  %s2 = inlined_call_operand.vmem [shape: f32[4,128], index: 2, kind: input, shape index: {}]
  %s3 = inlined_call_operand.vmem [shape: f32[2,128], index: 3, kind: input, shape index: {}]
  %s4 = inlined_call_operand.vmem [shape: f32[1,128], index: 4, kind: input, shape index: {}]
  %s5 = inlined_call_operand.vmem [shape: f32[128,128], index: 5, kind: input, shape index: {}]
  %s6 = inlined_call_operand.vmem [shape: f32[1,128], index: 6, kind: input, shape index: {}]
  %s7 = inlined_call_operand.vmem [shape: f32[128,1], index: 7, kind: input, shape index: {}]
  %s8 = inlined_call_operand.<no memory space> [shape: f32[1,1], index: 8, kind: input, shape index: {}]
  %s9 = inlined_call_operand.vmem [shape: f32[1,1,128], index: 9, kind: output, shape index: {}]
  %s10 = sld [smem:[#allocation0]]
  $region46: #{_soft_q_forward.1} parent=0
    _
  %s12 = ssub.s32 1, %s10
  %s13 = scalar_select 0, %s12, %s10
  %v14 = vstv %s8
  %15 = vst [vmem:[#allocation2] sm:$0x1] %v14
  // Predicated region
  $region2: #{_soft_q_forward.1} parent=0 // pred_check
    _
  $region3: #{_soft_q_forward.1} parent=0 // pred_check_branch
    %17 = sbr.rel (0) target = $region5
  $region4: #{_soft_q_forward.1} parent=0 // pred_region
    _
  $region5: #{_soft_q_forward.1} parent=0 // pred_fallthru
    _
  // Predicated region
  $region6: #{_soft_q_forward.1} parent=0 // pred_check
    _
  $region7: #{_soft_q_forward.1} parent=0 // pred_check_branch
    %19 = sbr.rel (0) target = $region9
  $region8: #{_soft_q_forward.1} parent=0 // pred_region
    _
  $region9: #{_soft_q_forward.1} parent=0 // pred_fallthru
    _
  // Predicated region
  $region10: #{_soft_q_forward.1} parent=0 // pred_check
    _
  $region11: #{_soft_q_forward.1} parent=0 // pred_check_branch
    %21 = sbr.rel (0) target = $region13
  $region12: #{_soft_q_forward.1} parent=0 // pred_region
    _
  $region13: #{_soft_q_forward.1} parent=0 // pred_fallthru
    _
  // Predicated region
  $region14: #{_soft_q_forward.1} parent=0 // pred_check
    _
  $region15: #{_soft_q_forward.1} parent=0 // pred_check_branch
    %23 = sbr.rel (0) target = $region17
  $region16: #{_soft_q_forward.1} parent=0 // pred_region
    _
  $region17: #{_soft_q_forward.1} parent=0 // pred_fallthru
    _
  // Predicated region
  $region18: #{_soft_q_forward.1} parent=0 // pred_check
    _
  $region19: #{_soft_q_forward.1} parent=0 // pred_check_branch
    %25 = sbr.rel (0) target = $region21
  $region20: #{_soft_q_forward.1} parent=0 // pred_region
    _
  $region21: #{_soft_q_forward.1} parent=0 // pred_fallthru
    _
  // Predicated region
  $region22: #{_soft_q_forward.1} parent=0 // pred_check
    _
  $region23: #{_soft_q_forward.1} parent=0 // pred_check_branch
    %27 = sbr.rel (0) target = $region25
  $region24: #{_soft_q_forward.1} parent=0 // pred_region
    _
  $region25: #{_soft_q_forward.1} parent=0 // pred_fallthru
    _
  // Predicated region
  $region26: #{_soft_q_forward.1} parent=0 // pred_check
    _
  $region27: #{_soft_q_forward.1} parent=0 // pred_check_branch
    %29 = sbr.rel (0) target = $region29
  $region28: #{_soft_q_forward.1} parent=0 // pred_region
    _
  $region29: #{_soft_q_forward.1} parent=0 // pred_fallthru
    _
  // Predicated region
  $region30: #{_soft_q_forward.1} parent=0 // pred_check
    _
  $region31: #{_soft_q_forward.1} parent=0 // pred_check_branch
    %31 = sbr.rel (0) target = $region33
  $region32: #{_soft_q_forward.1} parent=0 // pred_region
    _
  $region33: #{_soft_q_forward.1} parent=0 // pred_fallthru
    _
  // Predicated region
  $region34: #{_soft_q_forward.1} parent=0 // pred_check
    _
  $region35: #{_soft_q_forward.1} parent=0 // pred_check_branch
    %33 = sbr.rel (0) target = $region37
  $region36: #{_soft_q_forward.1} parent=0 // pred_region
    _
  $region37: #{_soft_q_forward.1} parent=0 // pred_fallthru
    _
  %v34 = vld [vmem:[%s0] sm:$0xff]
  %v35 = vld [vmem:[%s0 + $0x8] sm:$0xff]
  %v36 = vld [vmem:[%s0 + $0x10] sm:$0xff]
  %v37 = vld [vmem:[%s0 + $0x18] sm:$0xff]
  %v38 = vld [vmem:[%s0 + $0x20] sm:$0xff]
  %v39 = vld [vmem:[%s0 + $0x28] sm:$0xff]
  %v40 = vld [vmem:[%s0 + $0x30] sm:$0xff]
  %v41 = vld [vmem:[%s0 + $0x38] sm:$0xff]
  %v42 = vld [vmem:[%s0 + $0x40] sm:$0xff]
  %v43 = vld [vmem:[%s0 + $0x48] sm:$0xff]
  %v44 = vld [vmem:[%s0 + $0x50] sm:$0xff]
  %v45 = vld [vmem:[%s0 + $0x58] sm:$0xff]
  %v46 = vld [vmem:[%s0 + $0x60] sm:$0xff]
  %v47 = vld [vmem:[%s0 + $0x68] sm:$0xff]
  %v48 = vld [vmem:[%s0 + $0x70] sm:$0xff]
  %v49 = vld [vmem:[%s0 + $0x78] sm:$0xff]
  %v50 = vld [vmem:[%s2] sm:$0xf]
  %v51 = vld [vmem:[%s1] sm:$0xff]
  %v52 = vld [vmem:[%s1 + $0x8] sm:$0xff]
  %v53 = vld [vmem:[%s1 + $0x10] sm:$0xff]
  %v54 = vld [vmem:[%s1 + $0x18] sm:$0xff]
  %v55 = vld [vmem:[%s1 + $0x20] sm:$0xff]
  %v56 = vld [vmem:[%s1 + $0x28] sm:$0xff]
  %v57 = vld [vmem:[%s1 + $0x30] sm:$0xff]
  %v58 = vld [vmem:[%s1 + $0x38] sm:$0xff]
  %v59 = vld [vmem:[%s1 + $0x40] sm:$0xff]
  %v60 = vld [vmem:[%s1 + $0x48] sm:$0xff]
  %v61 = vld [vmem:[%s1 + $0x50] sm:$0xff]
  %v62 = vld [vmem:[%s1 + $0x58] sm:$0xff]
  %v63 = vld [vmem:[%s1 + $0x60] sm:$0xff]
  %v64 = vld [vmem:[%s1 + $0x68] sm:$0xff]
  %v65 = vld [vmem:[%s1 + $0x70] sm:$0xff]
  %v66 = vld [vmem:[%s1 + $0x78] sm:$0xff]
  %v67 = vld [vmem:[%s3] sm:$0x3]
  %vm68 = vcmask 15360
  %v70 = vsel %vm68, %v51, 0
  %v73 = vsel %vm68, %v52, 0
  %v76 = vsel %vm68, %v53, 0
  %v79 = vsel %vm68, %v54, 0
  %v82 = vsel %vm68, %v55, 0
  %v85 = vsel %vm68, %v56, 0
  %v88 = vsel %vm68, %v57, 0
  %v91 = vsel %vm68, %v58, 0
  %v94 = vsel %vm68, %v59, 0
  %v97 = vsel %vm68, %v60, 0
  %v100 = vsel %vm68, %v61, 0
  %v103 = vsel %vm68, %v62, 0
  %v106 = vsel %vm68, %v63, 0
  %v109 = vsel %vm68, %v64, 0
  %v112 = vsel %vm68, %v65, 0
  %v115 = vsel %vm68, %v66, 0
  %vm117 = vcmask 1041408
  %v119 = vsel %vm117, %v67, 0
  %121 = vmatprep.subr.mxu0 0.0
  %122 = vmatpush1.msra.mxu0 0.0
  %123 = vmatprep.subr.mxu0 0.0
  %124 = vmatpush1.msra.mxu0 0.0
  %125 = vmatprep.subr.mxu0 0.0
  %126 = vmatpush1.msra.mxu0 0.0
  %127 = vmatprep.subr.mxu0 0.0
  %128 = vmatpush1.msra.mxu0 0.0
  %129 = vmatprep.subr.mxu0 0.0
  %130 = vmatpush1.msra.mxu0 0.0
  %131 = vmatprep.subr.mxu0 0.0
  %132 = vmatpush1.msra.mxu0 0.0
  %133 = vmatprep.subr.mxu0 0.0
  %134 = vmatpush1.msra.mxu0 0.0
  %135 = vmatprep.subr.mxu0 0.0
  %136 = vmatpush1.msra.mxu0 0.0
  %137 = vmatprep.subr.mxu0 0.0
  %138 = vmatpush1.msra.mxu0 0.0
  %139 = vmatprep.subr.mxu0 0.0
  %140 = vmatpush1.msra.mxu0 0.0
  %141 = vmatprep.subr.mxu0 0.0
  %142 = vmatpush1.msra.mxu0 0.0
  %143 = vmatprep.subr.mxu0 0.0
  %144 = vmatpush1.msra.mxu0 0.0
  %145 = vmatprep.subr.mxu0 0.0
  %146 = vmatpush1.msra.mxu0 0.0
  %147 = vmatprep.subr.mxu0 0.0
  %148 = vmatpush1.msra.mxu0 0.0
  %149 = vmatprep.subr.mxu0 0.0
  %150 = vmatpush1.msra.mxu0 0.0
  %151 = vmatprep.subr.mxu0 0.0
  %152 = vmatpush1.msra.mxu0 %v119
  %153 = vmatprep.subr.mxu0 0.0
  %154 = vmatpush2.msra.mxu0 0.0
  %155 = vmatprep.subr.mxu0 0.0
  %156 = vmatpush2.msra.mxu0 0.0
  %157 = vmatprep.subr.mxu0 0.0
  %158 = vmatpush2.msra.mxu0 0.0
  %159 = vmatprep.subr.mxu0 0.0
  %160 = vmatpush2.msra.mxu0 0.0
  %161 = vmatprep.subr.mxu0 0.0
  %162 = vmatpush2.msra.mxu0 0.0
  %163 = vmatprep.subr.mxu0 0.0
  %164 = vmatpush2.msra.mxu0 0.0
  %165 = vmatprep.subr.mxu0 0.0
  %166 = vmatpush2.msra.mxu0 0.0
  %167 = vmatprep.subr.mxu0 0.0
  %168 = vmatpush2.msra.mxu0 0.0
  %169 = vmatprep.subr.mxu0 0.0
  %170 = vmatpush2.msra.mxu0 0.0
  %171 = vmatprep.subr.mxu0 0.0
  %172 = vmatpush2.msra.mxu0 0.0
  %173 = vmatprep.subr.mxu0 0.0
  %174 = vmatpush2.msra.mxu0 0.0
  %175 = vmatprep.subr.mxu0 0.0
  %176 = vmatpush2.msra.mxu0 0.0
  %177 = vmatprep.subr.mxu0 0.0
  %178 = vmatpush2.msra.mxu0 0.0
  %179 = vmatprep.subr.mxu0 0.0
  %180 = vmatpush2.msra.mxu0 0.0
  %181 = vmatprep.subr.mxu0 0.0
  %182 = vmatpush2.msra.mxu0 0.0
  %183 = vmatprep.subr.mxu0 0.0
  %184 = vmatpush2.msra.mxu0 0.0
  %185 = vmatprep.mubr.f32.mxu0 0.0
  %186 = vmatmul.mubr.f32.gmra.mxu0 %v70
  %v187 = vpop.f32.mrf.mxu0
  %v188 = vadd.f32 0.0, %v187
  %v189 = vpop.f32.mrf.mxu0
  %190 = vmatprep.mubr.f32.mxu0 0.0
  %191 = vmatmul.mubr.f32.gmra.mxu0 %v73
  %v192 = vpop.f32.mrf.mxu0
  %v193 = vadd.f32 0.0, %v192
  %v194 = vpop.f32.mrf.mxu0
  %195 = vmatprep.mubr.f32.mxu0 0.0
  %196 = vmatmul.mubr.f32.gmra.mxu0 %v76
  %v197 = vpop.f32.mrf.mxu0
  %v198 = vadd.f32 0.0, %v197
  %v199 = vpop.f32.mrf.mxu0
  %200 = vmatprep.mubr.f32.mxu0 0.0
  %201 = vmatmul.mubr.f32.gmra.mxu0 %v79
  %v202 = vpop.f32.mrf.mxu0
  %v203 = vadd.f32 0.0, %v202
  %v204 = vpop.f32.mrf.mxu0
  %205 = vmatprep.mubr.f32.mxu0 0.0
  %206 = vmatmul.mubr.f32.gmra.mxu0 %v82
  %v207 = vpop.f32.mrf.mxu0
  %v208 = vadd.f32 0.0, %v207
  %v209 = vpop.f32.mrf.mxu0
  %210 = vmatprep.mubr.f32.mxu0 0.0
  %211 = vmatmul.mubr.f32.gmra.mxu0 %v85
  %v212 = vpop.f32.mrf.mxu0
  %v213 = vadd.f32 0.0, %v212
  %v214 = vpop.f32.mrf.mxu0
  %215 = vmatprep.mubr.f32.mxu0 0.0
  %216 = vmatmul.mubr.f32.gmra.mxu0 %v88
  %v217 = vpop.f32.mrf.mxu0
  %v218 = vadd.f32 0.0, %v217
  %v219 = vpop.f32.mrf.mxu0
  %220 = vmatprep.mubr.f32.mxu0 0.0
  %221 = vmatmul.mubr.f32.gmra.mxu0 %v91
  %v222 = vpop.f32.mrf.mxu0
  %v223 = vadd.f32 0.0, %v222
  %v224 = vpop.f32.mrf.mxu0
  %225 = vmatprep.mubr.f32.mxu0 0.0
  %226 = vmatmul.mubr.f32.gmra.mxu0 %v94
  %v227 = vpop.f32.mrf.mxu0
  %v228 = vadd.f32 0.0, %v227
  %v229 = vpop.f32.mrf.mxu0
  %230 = vmatprep.mubr.f32.mxu0 0.0
  %231 = vmatmul.mubr.f32.gmra.mxu0 %v97
  %v232 = vpop.f32.mrf.mxu0
  %v233 = vadd.f32 0.0, %v232
  %v234 = vpop.f32.mrf.mxu0
  %235 = vmatprep.mubr.f32.mxu0 0.0
  %236 = vmatmul.mubr.f32.gmra.mxu0 %v100
  %v237 = vpop.f32.mrf.mxu0
  %v238 = vadd.f32 0.0, %v237
  %v239 = vpop.f32.mrf.mxu0
  %240 = vmatprep.mubr.f32.mxu0 0.0
  %241 = vmatmul.mubr.f32.gmra.mxu0 %v103
  %v242 = vpop.f32.mrf.mxu0
  %v243 = vadd.f32 0.0, %v242
  %v244 = vpop.f32.mrf.mxu0
  %245 = vmatprep.mubr.f32.mxu0 0.0
  %246 = vmatmul.mubr.f32.gmra.mxu0 %v106
  %v247 = vpop.f32.mrf.mxu0
  %v248 = vadd.f32 0.0, %v247
  %v249 = vpop.f32.mrf.mxu0
  %250 = vmatprep.mubr.f32.mxu0 0.0
  %251 = vmatmul.mubr.f32.gmra.mxu0 %v109
  %v252 = vpop.f32.mrf.mxu0
  %v253 = vadd.f32 0.0, %v252
  %v254 = vpop.f32.mrf.mxu0
  %255 = vmatprep.mubr.f32.mxu0 0.0
  %256 = vmatmul.mubr.f32.gmra.mxu0 %v112
  %v257 = vpop.f32.mrf.mxu0
  %v258 = vadd.f32 0.0, %v257
  %v259 = vpop.f32.mrf.mxu0
  %260 = vmatprep.mubr.f32.mxu0 0.0
  %261 = vmatmul.mubr.f32.gmra.mxu0 %v115
  %v262 = vpop.f32.mrf.mxu0
  %v263 = vadd.f32 0.0, %v262
  %v264 = vpop.f32.mrf.mxu0
  %265 = vdwg.mxu0
  %vm266 = vcmask 31744
  %v268 = vsel %vm266, %v34, 0
  %v271 = vsel %vm266, %v35, 0
  %v274 = vsel %vm266, %v36, 0
  %v277 = vsel %vm266, %v37, 0
  %v280 = vsel %vm266, %v38, 0
  %v283 = vsel %vm266, %v39, 0
  %v286 = vsel %vm266, %v40, 0
  %v289 = vsel %vm266, %v41, 0
  %v292 = vsel %vm266, %v42, 0
  %v295 = vsel %vm266, %v43, 0
  %v298 = vsel %vm266, %v44, 0
  %v301 = vsel %vm266, %v45, 0
  %v304 = vsel %vm266, %v46, 0
  %v307 = vsel %vm266, %v47, 0
  %v310 = vsel %vm266, %v48, 0
  %v313 = vsel %vm266, %v49, 0
  %vm315 = vcmask 1043456
  %v317 = vsel %vm315, %v50, 0
  %319 = vmatprep.subr.mxu0 0.0
  %320 = vmatpush1.msra.mxu0 0.0
  %321 = vmatprep.subr.mxu0 0.0
  %322 = vmatpush1.msra.mxu0 0.0
  %323 = vmatprep.subr.mxu0 0.0
  %324 = vmatpush1.msra.mxu0 0.0
  %325 = vmatprep.subr.mxu0 0.0
  %326 = vmatpush1.msra.mxu0 0.0
  %327 = vmatprep.subr.mxu0 0.0
  %328 = vmatpush1.msra.mxu0 0.0
  %329 = vmatprep.subr.mxu0 0.0
  %330 = vmatpush1.msra.mxu0 0.0
  %331 = vmatprep.subr.mxu0 0.0
  %332 = vmatpush1.msra.mxu0 0.0
  %333 = vmatprep.subr.mxu0 0.0
  %334 = vmatpush1.msra.mxu0 0.0
  %335 = vmatprep.subr.mxu0 0.0
  %336 = vmatpush1.msra.mxu0 0.0
  %337 = vmatprep.subr.mxu0 0.0
  %338 = vmatpush1.msra.mxu0 0.0
  %339 = vmatprep.subr.mxu0 0.0
  %340 = vmatpush1.msra.mxu0 0.0
  %341 = vmatprep.subr.mxu0 0.0
  %342 = vmatpush1.msra.mxu0 0.0
  %343 = vmatprep.subr.mxu0 0.0
  %344 = vmatpush1.msra.mxu0 0.0
  %345 = vmatprep.subr.mxu0 0.0
  %346 = vmatpush1.msra.mxu0 0.0
  %347 = vmatprep.subr.mxu0 0.0
  %348 = vmatpush1.msra.mxu0 0.0
  %349 = vmatprep.subr.mxu0 0.0
  %350 = vmatpush1.msra.mxu0 %v317
  %351 = vmatprep.subr.mxu0 0.0
  %352 = vmatpush2.msra.mxu0 0.0
  %353 = vmatprep.subr.mxu0 0.0
  %354 = vmatpush2.msra.mxu0 0.0
  %355 = vmatprep.subr.mxu0 0.0
  %356 = vmatpush2.msra.mxu0 0.0
  %357 = vmatprep.subr.mxu0 0.0
  %358 = vmatpush2.msra.mxu0 0.0
  %359 = vmatprep.subr.mxu0 0.0
  %360 = vmatpush2.msra.mxu0 0.0
  %361 = vmatprep.subr.mxu0 0.0
  %362 = vmatpush2.msra.mxu0 0.0
  %363 = vmatprep.subr.mxu0 0.0
  %364 = vmatpush2.msra.mxu0 0.0
  %365 = vmatprep.subr.mxu0 0.0
  %366 = vmatpush2.msra.mxu0 0.0
  %367 = vmatprep.subr.mxu0 0.0
  %368 = vmatpush2.msra.mxu0 0.0
  %369 = vmatprep.subr.mxu0 0.0
  %370 = vmatpush2.msra.mxu0 0.0
  %371 = vmatprep.subr.mxu0 0.0
  %372 = vmatpush2.msra.mxu0 0.0
  %373 = vmatprep.subr.mxu0 0.0
  %374 = vmatpush2.msra.mxu0 0.0
  %375 = vmatprep.subr.mxu0 0.0
  %376 = vmatpush2.msra.mxu0 0.0
  %377 = vmatprep.subr.mxu0 0.0
  %378 = vmatpush2.msra.mxu0 0.0
  %379 = vmatprep.subr.mxu0 0.0
  %380 = vmatpush2.msra.mxu0 0.0
  %381 = vmatprep.subr.mxu0 0.0
  %382 = vmatpush2.msra.mxu0 0.0
  %383 = vmatprep.mubr.f32.mxu0 0.0
  %384 = vmatmul.mubr.f32.gmra.mxu0 %v268
  %v385 = vpop.f32.mrf.mxu0
  %v386 = vadd.f32 %v188, %v385
  %v387 = vpop.f32.mrf.mxu0
  %388 = vmatprep.mubr.f32.mxu0 0.0
  %389 = vmatmul.mubr.f32.gmra.mxu0 %v271
  %v390 = vpop.f32.mrf.mxu0
  %v391 = vadd.f32 %v193, %v390
  %v392 = vpop.f32.mrf.mxu0
  %393 = vmatprep.mubr.f32.mxu0 0.0
  %394 = vmatmul.mubr.f32.gmra.mxu0 %v274
  %v395 = vpop.f32.mrf.mxu0
  %v396 = vadd.f32 %v198, %v395
  %v397 = vpop.f32.mrf.mxu0
  %398 = vmatprep.mubr.f32.mxu0 0.0
  %399 = vmatmul.mubr.f32.gmra.mxu0 %v277
  %v400 = vpop.f32.mrf.mxu0
  %v401 = vadd.f32 %v203, %v400
  %v402 = vpop.f32.mrf.mxu0
  %403 = vmatprep.mubr.f32.mxu0 0.0
  %404 = vmatmul.mubr.f32.gmra.mxu0 %v280
  %v405 = vpop.f32.mrf.mxu0
  %v406 = vadd.f32 %v208, %v405
  %v407 = vpop.f32.mrf.mxu0
  %408 = vmatprep.mubr.f32.mxu0 0.0
  %409 = vmatmul.mubr.f32.gmra.mxu0 %v283
  %v410 = vpop.f32.mrf.mxu0
  %v411 = vadd.f32 %v213, %v410
  %v412 = vpop.f32.mrf.mxu0
  %413 = vmatprep.mubr.f32.mxu0 0.0
  %414 = vmatmul.mubr.f32.gmra.mxu0 %v286
  %v415 = vpop.f32.mrf.mxu0
  %v416 = vadd.f32 %v218, %v415
  %v417 = vpop.f32.mrf.mxu0
  %418 = vmatprep.mubr.f32.mxu0 0.0
  %419 = vmatmul.mubr.f32.gmra.mxu0 %v289
  %v420 = vpop.f32.mrf.mxu0
  %v421 = vadd.f32 %v223, %v420
  %v422 = vpop.f32.mrf.mxu0
  %423 = vmatprep.mubr.f32.mxu0 0.0
  %424 = vmatmul.mubr.f32.gmra.mxu0 %v292
  %v425 = vpop.f32.mrf.mxu0
  %v426 = vadd.f32 %v228, %v425
  %v427 = vpop.f32.mrf.mxu0
  %428 = vmatprep.mubr.f32.mxu0 0.0
  %429 = vmatmul.mubr.f32.gmra.mxu0 %v295
  %v430 = vpop.f32.mrf.mxu0
  %v431 = vadd.f32 %v233, %v430
  %v432 = vpop.f32.mrf.mxu0
  %433 = vmatprep.mubr.f32.mxu0 0.0
  %434 = vmatmul.mubr.f32.gmra.mxu0 %v298
  %v435 = vpop.f32.mrf.mxu0
  %v436 = vadd.f32 %v238, %v435
  %v437 = vpop.f32.mrf.mxu0
  %438 = vmatprep.mubr.f32.mxu0 0.0
  %439 = vmatmul.mubr.f32.gmra.mxu0 %v301
  %v440 = vpop.f32.mrf.mxu0
  %v441 = vadd.f32 %v243, %v440
  %v442 = vpop.f32.mrf.mxu0
  %443 = vmatprep.mubr.f32.mxu0 0.0
  %444 = vmatmul.mubr.f32.gmra.mxu0 %v304
  %v445 = vpop.f32.mrf.mxu0
  %v446 = vadd.f32 %v248, %v445
  %v447 = vpop.f32.mrf.mxu0
  %448 = vmatprep.mubr.f32.mxu0 0.0
  %449 = vmatmul.mubr.f32.gmra.mxu0 %v307
  %v450 = vpop.f32.mrf.mxu0
  %v451 = vadd.f32 %v253, %v450
  %v452 = vpop.f32.mrf.mxu0
  %453 = vmatprep.mubr.f32.mxu0 0.0
  %454 = vmatmul.mubr.f32.gmra.mxu0 %v310
  %v455 = vpop.f32.mrf.mxu0
  %v456 = vadd.f32 %v258, %v455
  %v457 = vpop.f32.mrf.mxu0
  %458 = vmatprep.mubr.f32.mxu0 0.0
  %459 = vmatmul.mubr.f32.gmra.mxu0 %v313
  %v460 = vpop.f32.mrf.mxu0
  %v461 = vadd.f32 %v263, %v460
  %v462 = vpop.f32.mrf.mxu0
  %463 = vdwg.mxu0
  %v464 = vld [vmem:[%s4] sm:$0x1]
  %v466 = vlaneseq
  %v467 = vshrl.u32 %v466, 7
  %v468 = vsub.s32 0, %v467
  %v469 = vrot.slane %v464, %v468
  %v471 = vadd.f32 %v386, %v469
  %v472 = vadd.f32 %v391, %v469
  %v473 = vadd.f32 %v396, %v469
  %v474 = vadd.f32 %v401, %v469
  %v475 = vadd.f32 %v406, %v469
  %v476 = vadd.f32 %v411, %v469
  %v477 = vadd.f32 %v416, %v469
  %v478 = vadd.f32 %v421, %v469
  %v479 = vadd.f32 %v426, %v469
  %v480 = vadd.f32 %v431, %v469
  %v481 = vadd.f32 %v436, %v469
  %v482 = vadd.f32 %v441, %v469
  %v483 = vadd.f32 %v446, %v469
  %v484 = vadd.f32 %v451, %v469
  %v485 = vadd.f32 %v456, %v469
  %v486 = vadd.f32 %v461, %v469
  %v487 = vmax.f32 %v471, 0.0
  %v488 = vmax.f32 %v472, 0.0
  %v489 = vmax.f32 %v473, 0.0
  %v490 = vmax.f32 %v474, 0.0
  %v491 = vmax.f32 %v475, 0.0
  %v492 = vmax.f32 %v476, 0.0
  %v493 = vmax.f32 %v477, 0.0
  %v494 = vmax.f32 %v478, 0.0
  %v495 = vmax.f32 %v479, 0.0
  %v496 = vmax.f32 %v480, 0.0
  %v497 = vmax.f32 %v481, 0.0
  %v498 = vmax.f32 %v482, 0.0
  %v499 = vmax.f32 %v483, 0.0
  %v500 = vmax.f32 %v484, 0.0
  %v501 = vmax.f32 %v485, 0.0
  %v502 = vmax.f32 %v486, 0.0
  %v503 = vld [vmem:[%s5] sm:$0xff]
  %v504 = vld [vmem:[%s5 + $0x8] sm:$0xff]
  %v505 = vld [vmem:[%s5 + $0x10] sm:$0xff]
  %v506 = vld [vmem:[%s5 + $0x18] sm:$0xff]
  %v507 = vld [vmem:[%s5 + $0x20] sm:$0xff]
  %v508 = vld [vmem:[%s5 + $0x28] sm:$0xff]
  %v509 = vld [vmem:[%s5 + $0x30] sm:$0xff]
  %v510 = vld [vmem:[%s5 + $0x38] sm:$0xff]
  %v511 = vld [vmem:[%s5 + $0x40] sm:$0xff]
  %v512 = vld [vmem:[%s5 + $0x48] sm:$0xff]
  %v513 = vld [vmem:[%s5 + $0x50] sm:$0xff]
  %v514 = vld [vmem:[%s5 + $0x58] sm:$0xff]
  %v515 = vld [vmem:[%s5 + $0x60] sm:$0xff]
  %v516 = vld [vmem:[%s5 + $0x68] sm:$0xff]
  %v517 = vld [vmem:[%s5 + $0x70] sm:$0xff]
  %v518 = vld [vmem:[%s5 + $0x78] sm:$0xff]
  %v519 = vld [vmem:[%s6] sm:$0x1]
  %v521 = vlaneseq
  %v522 = vshrl.u32 %v521, 7
  %v523 = vsub.s32 0, %v522
  %v524 = vrot.slane %v519, %v523
  %526 = vmatprep.subr.mxu0 0.0
  %527 = vmatpush1.msra.mxu0 %v518
  %528 = vmatprep.subr.mxu0 0.0
  %529 = vmatpush1.msra.mxu0 %v517
  %530 = vmatprep.subr.mxu0 0.0
  %531 = vmatpush1.msra.mxu0 %v516
  %532 = vmatprep.subr.mxu0 0.0
  %533 = vmatpush1.msra.mxu0 %v515
  %534 = vmatprep.subr.mxu0 0.0
  %535 = vmatpush1.msra.mxu0 %v514
  %536 = vmatprep.subr.mxu0 0.0
  %537 = vmatpush1.msra.mxu0 %v513
  %538 = vmatprep.subr.mxu0 0.0
  %539 = vmatpush1.msra.mxu0 %v512
  %540 = vmatprep.subr.mxu0 0.0
  %541 = vmatpush1.msra.mxu0 %v511
  %542 = vmatprep.subr.mxu0 0.0
  %543 = vmatpush1.msra.mxu0 %v510
  %544 = vmatprep.subr.mxu0 0.0
  %545 = vmatpush1.msra.mxu0 %v509
  %546 = vmatprep.subr.mxu0 0.0
  %547 = vmatpush1.msra.mxu0 %v508
  %548 = vmatprep.subr.mxu0 0.0
  %549 = vmatpush1.msra.mxu0 %v507
  %550 = vmatprep.subr.mxu0 0.0
  %551 = vmatpush1.msra.mxu0 %v506
  %552 = vmatprep.subr.mxu0 0.0
  %553 = vmatpush1.msra.mxu0 %v505
  %554 = vmatprep.subr.mxu0 0.0
  %555 = vmatpush1.msra.mxu0 %v504
  %556 = vmatprep.subr.mxu0 0.0
  %557 = vmatpush1.msra.mxu0 %v503
  %558 = vmatprep.subr.mxu0 0.0
  %559 = vmatpush2.msra.mxu0 0.0
  %560 = vmatprep.subr.mxu0 0.0
  %561 = vmatpush2.msra.mxu0 0.0
  %562 = vmatprep.subr.mxu0 0.0
  %563 = vmatpush2.msra.mxu0 0.0
  %564 = vmatprep.subr.mxu0 0.0
  %565 = vmatpush2.msra.mxu0 0.0
  %566 = vmatprep.subr.mxu0 0.0
  %567 = vmatpush2.msra.mxu0 0.0
  %568 = vmatprep.subr.mxu0 0.0
  %569 = vmatpush2.msra.mxu0 0.0
  %570 = vmatprep.subr.mxu0 0.0
  %571 = vmatpush2.msra.mxu0 0.0
  %572 = vmatprep.subr.mxu0 0.0
  %573 = vmatpush2.msra.mxu0 0.0
  %574 = vmatprep.subr.mxu0 0.0
  %575 = vmatpush2.msra.mxu0 0.0
  %576 = vmatprep.subr.mxu0 0.0
  %577 = vmatpush2.msra.mxu0 0.0
  %578 = vmatprep.subr.mxu0 0.0
  %579 = vmatpush2.msra.mxu0 0.0
  %580 = vmatprep.subr.mxu0 0.0
  %581 = vmatpush2.msra.mxu0 0.0
  %582 = vmatprep.subr.mxu0 0.0
  %583 = vmatpush2.msra.mxu0 0.0
  %584 = vmatprep.subr.mxu0 0.0
  %585 = vmatpush2.msra.mxu0 0.0
  %586 = vmatprep.subr.mxu0 0.0
  %587 = vmatpush2.msra.mxu0 0.0
  %588 = vmatprep.subr.mxu0 0.0
  %589 = vmatpush2.msra.mxu0 0.0
  %590 = vmatprep.mubr.f32.mxu0 0.0
  %591 = vmatmul.mubr.f32.gmra.mxu0 %v487
  %v592 = vpop.f32.mrf.mxu0
  %v593 = vadd.f32 %v524, %v592
  %v594 = vpop.f32.mrf.mxu0
  %595 = vmatprep.mubr.f32.mxu0 0.0
  %596 = vmatmul.mubr.f32.gmra.mxu0 %v488
  %v597 = vpop.f32.mrf.mxu0
  %v598 = vadd.f32 %v524, %v597
  %v599 = vpop.f32.mrf.mxu0
  %600 = vmatprep.mubr.f32.mxu0 0.0
  %601 = vmatmul.mubr.f32.gmra.mxu0 %v489
  %v602 = vpop.f32.mrf.mxu0
  %v603 = vadd.f32 %v524, %v602
  %v604 = vpop.f32.mrf.mxu0
  %605 = vmatprep.mubr.f32.mxu0 0.0
  %606 = vmatmul.mubr.f32.gmra.mxu0 %v490
  %v607 = vpop.f32.mrf.mxu0
  %v608 = vadd.f32 %v524, %v607
  %v609 = vpop.f32.mrf.mxu0
  %610 = vmatprep.mubr.f32.mxu0 0.0
  %611 = vmatmul.mubr.f32.gmra.mxu0 %v491
  %v612 = vpop.f32.mrf.mxu0
  %v613 = vadd.f32 %v524, %v612
  %v614 = vpop.f32.mrf.mxu0
  %615 = vmatprep.mubr.f32.mxu0 0.0
  %616 = vmatmul.mubr.f32.gmra.mxu0 %v492
  %v617 = vpop.f32.mrf.mxu0
  %v618 = vadd.f32 %v524, %v617
  %v619 = vpop.f32.mrf.mxu0
  %620 = vmatprep.mubr.f32.mxu0 0.0
  %621 = vmatmul.mubr.f32.gmra.mxu0 %v493
  %v622 = vpop.f32.mrf.mxu0
  %v623 = vadd.f32 %v524, %v622
  %v624 = vpop.f32.mrf.mxu0
  %625 = vmatprep.mubr.f32.mxu0 0.0
  %626 = vmatmul.mubr.f32.gmra.mxu0 %v494
  %v627 = vpop.f32.mrf.mxu0
  %v628 = vadd.f32 %v524, %v627
  %v629 = vpop.f32.mrf.mxu0
  %630 = vmatprep.mubr.f32.mxu0 0.0
  %631 = vmatmul.mubr.f32.gmra.mxu0 %v495
  %v632 = vpop.f32.mrf.mxu0
  %v633 = vadd.f32 %v524, %v632
  %v634 = vpop.f32.mrf.mxu0
  %635 = vmatprep.mubr.f32.mxu0 0.0
  %636 = vmatmul.mubr.f32.gmra.mxu0 %v496
  %v637 = vpop.f32.mrf.mxu0
  %v638 = vadd.f32 %v524, %v637
  %v639 = vpop.f32.mrf.mxu0
  %640 = vmatprep.mubr.f32.mxu0 0.0
  %641 = vmatmul.mubr.f32.gmra.mxu0 %v497
  %v642 = vpop.f32.mrf.mxu0
  %v643 = vadd.f32 %v524, %v642
  %v644 = vpop.f32.mrf.mxu0
  %645 = vmatprep.mubr.f32.mxu0 0.0
  %646 = vmatmul.mubr.f32.gmra.mxu0 %v498
  %v647 = vpop.f32.mrf.mxu0
  %v648 = vadd.f32 %v524, %v647
  %v649 = vpop.f32.mrf.mxu0
  %650 = vmatprep.mubr.f32.mxu0 0.0
  %651 = vmatmul.mubr.f32.gmra.mxu0 %v499
  %v652 = vpop.f32.mrf.mxu0
  %v653 = vadd.f32 %v524, %v652
  %v654 = vpop.f32.mrf.mxu0
  %655 = vmatprep.mubr.f32.mxu0 0.0
  %656 = vmatmul.mubr.f32.gmra.mxu0 %v500
  %v657 = vpop.f32.mrf.mxu0
  %v658 = vadd.f32 %v524, %v657
  %v659 = vpop.f32.mrf.mxu0
  %660 = vmatprep.mubr.f32.mxu0 0.0
  %661 = vmatmul.mubr.f32.gmra.mxu0 %v501
  %v662 = vpop.f32.mrf.mxu0
  %v663 = vadd.f32 %v524, %v662
  %v664 = vpop.f32.mrf.mxu0
  %665 = vmatprep.mubr.f32.mxu0 0.0
  %666 = vmatmul.mubr.f32.gmra.mxu0 %v502
  %v667 = vpop.f32.mrf.mxu0
  %v668 = vadd.f32 %v524, %v667
  %v669 = vpop.f32.mrf.mxu0
  %670 = vdwg.mxu0
  %v671 = vmax.f32 %v593, 0.0
  %v672 = vmax.f32 %v598, 0.0
  %v673 = vmax.f32 %v603, 0.0
  %v674 = vmax.f32 %v608, 0.0
  %v675 = vmax.f32 %v613, 0.0
  %v676 = vmax.f32 %v618, 0.0
  %v677 = vmax.f32 %v623, 0.0
  %v678 = vmax.f32 %v628, 0.0
  %v679 = vmax.f32 %v633, 0.0
  %v680 = vmax.f32 %v638, 0.0
  %v681 = vmax.f32 %v643, 0.0
  %v682 = vmax.f32 %v648, 0.0
  %v683 = vmax.f32 %v653, 0.0
  %v684 = vmax.f32 %v658, 0.0
  %v685 = vmax.f32 %v663, 0.0
  %v686 = vmax.f32 %v668, 0.0
  %687 = vxpose.xlu0.b32.start [1/16] %v671, 128
  %688 = vxpose.xlu0.b32.cont [2/16] %v672, 128
  %689 = vxpose.xlu0.b32.cont [3/16] %v673, 128
  %690 = vxpose.xlu0.b32.cont [4/16] %v674, 128
  %691 = vxpose.xlu0.b32.cont [5/16] %v675, 128
  %692 = vxpose.xlu0.b32.cont [6/16] %v676, 128
  %693 = vxpose.xlu0.b32.cont [7/16] %v677, 128
  %694 = vxpose.xlu0.b32.cont [8/16] %v678, 128
  %695 = vxpose.xlu0.b32.cont [9/16] %v679, 128
  %696 = vxpose.xlu0.b32.cont [10/16] %v680, 128
  %697 = vxpose.xlu0.b32.cont [11/16] %v681, 128
  %698 = vxpose.xlu0.b32.cont [12/16] %v682, 128
  %699 = vxpose.xlu0.b32.cont [13/16] %v683, 128
  %700 = vxpose.xlu0.b32.cont [14/16] %v684, 128
  %701 = vxpose.xlu0.b32.cont [15/16] %v685, 128
  %702 = vxpose.xlu0.b32.end [16/16] %v686, 128
  %v703 = vpop.trf.xlu0
  %v704 = vpop.trf.xlu0
  %v705 = vpop.trf.xlu0
  %v706 = vpop.trf.xlu0
  %v707 = vpop.trf.xlu0
  %v708 = vpop.trf.xlu0
  %v709 = vpop.trf.xlu0
  %v710 = vpop.trf.xlu0
  %v711 = vpop.trf.xlu0
  %v712 = vpop.trf.xlu0
  %v713 = vpop.trf.xlu0
  %v714 = vpop.trf.xlu0
  %v715 = vpop.trf.xlu0
  %v716 = vpop.trf.xlu0
  %v717 = vpop.trf.xlu0
  %v718 = vpop.trf.xlu0
  %v719 = vld [vmem:[%s7] sm:$0xff]
  %v720 = vld [vmem:[%s7 + $0x8] sm:$0xff]
  %v721 = vld [vmem:[%s7 + $0x10] sm:$0xff]
  %v722 = vld [vmem:[%s7 + $0x18] sm:$0xff]
  %v723 = vld [vmem:[%s7 + $0x20] sm:$0xff]
  %v724 = vld [vmem:[%s7 + $0x28] sm:$0xff]
  %v725 = vld [vmem:[%s7 + $0x30] sm:$0xff]
  %v726 = vld [vmem:[%s7 + $0x38] sm:$0xff]
  %v727 = vld [vmem:[%s7 + $0x40] sm:$0xff]
  %v728 = vld [vmem:[%s7 + $0x48] sm:$0xff]
  %v729 = vld [vmem:[%s7 + $0x50] sm:$0xff]
  %v730 = vld [vmem:[%s7 + $0x58] sm:$0xff]
  %v731 = vld [vmem:[%s7 + $0x60] sm:$0xff]
  %v732 = vld [vmem:[%s7 + $0x68] sm:$0xff]
  %v733 = vld [vmem:[%s7 + $0x70] sm:$0xff]
  %v734 = vld [vmem:[%s7 + $0x78] sm:$0xff]
  %736 = vset.pattern.permute.xlu0 0
  %737 = vperm.xlu0 %736, %v719
  %v738 = vpop.permute.xlu0 %737
  %741 = vset.pattern.permute.xlu0 0
  %742 = vperm.xlu0 %741, %v720
  %v743 = vpop.permute.xlu0 %742
  %746 = vset.pattern.permute.xlu0 0
  %747 = vperm.xlu0 %746, %v721
  %v748 = vpop.permute.xlu0 %747
  %751 = vset.pattern.permute.xlu0 0
  %752 = vperm.xlu0 %751, %v722
  %v753 = vpop.permute.xlu0 %752
  %756 = vset.pattern.permute.xlu0 0
  %757 = vperm.xlu0 %756, %v723
  %v758 = vpop.permute.xlu0 %757
  %761 = vset.pattern.permute.xlu0 0
  %762 = vperm.xlu0 %761, %v724
  %v763 = vpop.permute.xlu0 %762
  %766 = vset.pattern.permute.xlu0 0
  %767 = vperm.xlu0 %766, %v725
  %v768 = vpop.permute.xlu0 %767
  %771 = vset.pattern.permute.xlu0 0
  %772 = vperm.xlu0 %771, %v726
  %v773 = vpop.permute.xlu0 %772
  %776 = vset.pattern.permute.xlu0 0
  %777 = vperm.xlu0 %776, %v727
  %v778 = vpop.permute.xlu0 %777
  %781 = vset.pattern.permute.xlu0 0
  %782 = vperm.xlu0 %781, %v728
  %v783 = vpop.permute.xlu0 %782
  %786 = vset.pattern.permute.xlu0 0
  %787 = vperm.xlu0 %786, %v729
  %v788 = vpop.permute.xlu0 %787
  %791 = vset.pattern.permute.xlu0 0
  %792 = vperm.xlu0 %791, %v730
  %v793 = vpop.permute.xlu0 %792
  %796 = vset.pattern.permute.xlu0 0
  %797 = vperm.xlu0 %796, %v731
  %v798 = vpop.permute.xlu0 %797
  %801 = vset.pattern.permute.xlu0 0
  %802 = vperm.xlu0 %801, %v732
  %v803 = vpop.permute.xlu0 %802
  %806 = vset.pattern.permute.xlu0 0
  %807 = vperm.xlu0 %806, %v733
  %v808 = vpop.permute.xlu0 %807
  %811 = vset.pattern.permute.xlu0 0
  %812 = vperm.xlu0 %811, %v734
  %v813 = vpop.permute.xlu0 %812
  %v815 = vmul.f32 %v703, %v738
  %v816 = vmul.f32 %v704, %v743
  %v817 = vmul.f32 %v705, %v748
  %v818 = vmul.f32 %v706, %v753
  %v819 = vmul.f32 %v707, %v758
  %v820 = vmul.f32 %v708, %v763
  %v821 = vmul.f32 %v709, %v768
  %v822 = vmul.f32 %v710, %v773
  %v823 = vmul.f32 %v711, %v778
  %v824 = vmul.f32 %v712, %v783
  %v825 = vmul.f32 %v713, %v788
  %v826 = vmul.f32 %v714, %v793
  %v827 = vmul.f32 %v715, %v798
  %v828 = vmul.f32 %v716, %v803
  %v829 = vmul.f32 %v717, %v808
  %v830 = vmul.f32 %v718, %v813
  %v831 = vadd.f32 %v815, %v816
  %v832 = vadd.f32 %v831, %v817
  %v833 = vadd.f32 %v832, %v818
  %v834 = vadd.f32 %v833, %v819
  %v835 = vadd.f32 %v834, %v820
  %v836 = vadd.f32 %v835, %v821
  %v837 = vadd.f32 %v836, %v822
  %v838 = vadd.f32 %v837, %v823
  %v839 = vadd.f32 %v838, %v824
  %v840 = vadd.f32 %v839, %v825
  %v841 = vadd.f32 %v840, %v826
  %v842 = vadd.f32 %v841, %v827
  %v843 = vadd.f32 %v842, %v828
  %v844 = vadd.f32 %v843, %v829
  %v845 = vadd.f32 %v844, %v830
  %v846 = vrot.slane %v845, 4
  %v847 = vadd.f32 %v845, %v846
  %v848 = vrot.slane %v847, 2
  %v849 = vadd.f32 %v847, %v848
  %v850 = vrot.slane %v849, 1
  %v851 = vadd.f32 %v849, %v850
  %v852 = vld [vmem:[#allocation2] sm:$0x1]
  %854 = vset.pattern.permute.xlu0 0
  %855 = vperm.xlu0 %854, %v852
  %v856 = vpop.permute.xlu0 %855
  %v858 = vlaneseq
  %v859 = vshrl.u32 %v858, 7
  %v860 = vsub.s32 0, %v859
  %v861 = vrot.slane %v856, %v860
  %v862 = vadd.f32 %v851, %v861
  %863 = vst [vmem:[%s9] sm:$0x1] %v862
  // Predicated region
  $region38: #{_soft_q_forward.1} parent=0 // pred_check
    _
  $region39: #{_soft_q_forward.1} parent=0 // pred_check_branch
    %865 = sbr.rel (0) target = $region41
  $region40: #{_soft_q_forward.1} parent=0 // pred_region
    _
  $region41: #{_soft_q_forward.1} parent=0 // pred_fallthru
    _
  // Predicated region
  $region42: #{_soft_q_forward.1} parent=0 // pred_check
    _
  $region43: #{_soft_q_forward.1} parent=0 // pred_check_branch
    %867 = sbr.rel (0) target = $region45
  $region44: #{_soft_q_forward.1} parent=0 // pred_region
    _
  $region45: #{_soft_q_forward.1} parent=0 // pred_fallthru
    _

</llo_original>
